<compile_context>
chip_gen: v5e
topology: v5e:2x2
jax: 0.10.0
libtpu: 0.0.40
codegen_flags: <defaults>
</compile_context>

<pallas_src>
import jax
import jax.numpy as jnp
from jax.experimental import pallas as pl
from jax.experimental.pallas import tpu as pltpu

LANE = 128      # lane width (last-dim tiling unit)
SUBLANE = 8     # f32 sublane granularity (second-to-last dim)


def _round_up(x, m):
    return (x + m - 1) // m * m


def eva_classifier_kernel(x_ref, w1_ref, b1_ref, w2_ref, b2_ref, o_ref):
    # Cast the input tile to the weight compute dtype right before the MXU op
    # (VPU cast hides under the matmul); both layers accumulate in f32.
    x = x_ref[...].astype(w1_ref.dtype)

    # h = relu(x @ W1 + b1).  W1 stored (input_size, nn_p): plain (M,K)x(K,N) dot.
    h = jnp.dot(x, w1_ref[...], preferred_element_type=jnp.float32)
    h = jnp.maximum(h + b1_ref[...], 0.0)

    # o = h @ W2 + b2.  W2 stored (nn_p, output_size); output left unpadded.
    o = jnp.dot(h.astype(w2_ref.dtype), w2_ref[...],
                preferred_element_type=jnp.float32)
    o_ref[...] = (o + b2_ref[...]).astype(o_ref.dtype)


def prepare_params(w1, b1, w2, b2, compute_dtype=jnp.bfloat16):
    """One-time parameter preparation (call once, reuse across forward calls).

    - Weights are transposed ONCE into the clean (K, N) layout so both layers are
      plain (M,K)x(K,N) dots (MXU-only lowering; no per-tile XLU transpose).
    - Only the hidden dim is zero-padded to a 128-lane multiple; padded lanes are
      exact zeros through matmul + bias + ReLU.  Input / output feature dims are
      left unpadded (kernel block shapes use the full array dims).
    - Weights cast to `compute_dtype` (bf16 default: halves weight DMA bytes and
      VMEM residency, fast MXU path); biases stay f32 (added after the
      f32-accumulated matmul).  Intentional: bf16 path has ~1e-2 relative error.
    """
    nn_size, input_size = w1.shape
    output_size = w2.shape[0]
    nn_p = _round_up(nn_size, LANE)

    w1p = jnp.zeros((input_size, nn_p), compute_dtype)
    w1p = w1p.at[:, :nn_size].set(w1.T.astype(compute_dtype))
    b1p = jnp.zeros((1, nn_p), jnp.float32).at[0, :nn_size].set(b1.astype(jnp.float32))
    w2p = jnp.zeros((nn_p, output_size), compute_dtype)
    w2p = w2p.at[:nn_size, :].set(w2.T.astype(compute_dtype))
    b2p = jnp.asarray(b2, jnp.float32).reshape(1, output_size)

    return {"w1": w1p, "b1": b1p, "w2": w2p, "b2": b2p,
            "input_size": input_size, "nn_size": nn_size, "output_size": output_size}


def _resident_spec(shape):
    """Block-resident operand: constant index_map, single-buffered (double-buffering
    a block that never changes only wastes VMEM)."""
    index_map = lambda *_: (0,) * len(shape)
    try:
        return pl.BlockSpec(shape, index_map, pipeline_mode=pl.Buffered(1))
    except TypeError:
        # Older JAX without pipeline_mode: fall back to default buffering.
        return pl.BlockSpec(shape, index_map)


def eva_classifier(x, params, *, block_b=512):
    """Forward pass: x (B, input_size) -> (B, output_size) f32.

    x is consumed as-is (no wrapper-side pad/cast/copy); the kernel casts each tile
    in-register.  Output is written unpadded.
    """
    w1p, b1p, w2p, b2p = params["w1"], params["b1"], params["w2"], params["b2"]
    input_size = params["input_size"]
    output_size = params["output_size"]
    nn_p = w1p.shape[1]
    B = x.shape[0]

    # Batch tile: dtype-aware sublane granularity (8 rows f32, 16 bf16, 32 int8).
    itemsize = jnp.dtype(x.dtype).itemsize
    sub = SUBLANE * max(1, 4 // itemsize)
    if B > sub:
        # Guarantee >= 2 grid steps whenever the batch allows it so the "parallel"
        # batch axis actually feeds both TensorCores on v7x.
        tb = min(block_b, _round_up(pl.cdiv(B, 2), sub))
    else:
        tb = min(block_b, _round_up(max(B, 1), sub))
    tb = max(_round_up(tb, sub), sub)
    grid = (pl.cdiv(B, tb),)

    # VMEM budget from the actual resident footprint: single-buffered weights/biases,
    # double-buffered x/out tiles, f32 hidden activation (may spill to VMEM), plus
    # margin; capped at 56 MiB (v7x has 64 MiB physical).
    w_bytes = (w1p.size * w1p.dtype.itemsize + w2p.size * w2p.dtype.itemsize
               + b1p.size * b1p.dtype.itemsize + b2p.size * b2p.dtype.itemsize)
    x_tile_bytes = 2 * tb * input_size * itemsize
    o_tile_bytes = 2 * tb * output_size * 4
    h_bytes = tb * nn_p * (4 + w1p.dtype.itemsize)
    vmem_limit = int(1.25 * (w_bytes + x_tile_bytes + o_tile_bytes + h_bytes)) + (4 << 20)
    vmem_limit = max(16 << 20, min(vmem_limit, 56 << 20))

    flops = 2 * B * (input_size * nn_p + nn_p * output_size)
    bytes_accessed = B * input_size * itemsize + w_bytes + B * output_size * 4

    return pl.pallas_call(
        eva_classifier_kernel,
        out_shape=jax.ShapeDtypeStruct((B, output_size), jnp.float32),
        grid=grid,
        in_specs=[
            pl.BlockSpec((tb, input_size), lambda i: (i, 0)),   # x: batch-tiled, full feature dim
            _resident_spec(w1p.shape),                          # W1: resident, single-buffered
            _resident_spec(b1p.shape),                          # b1: resident
            _resident_spec(w2p.shape),                          # W2: resident
            _resident_spec(b2p.shape),                          # b2: resident
        ],
        out_specs=pl.BlockSpec((tb, output_size), lambda i: (i, 0)),  # unpadded output block
        compiler_params=pltpu.CompilerParams(
            dimension_semantics=("parallel",),
            vmem_limit_bytes=int(vmem_limit),
        ),
        cost_estimate=pl.CostEstimate(
            flops=int(flops), transcendentals=0, bytes_accessed=int(bytes_accessed)),
    )(x, w1p, b1p, w2p, b2p)


def init_params(key, input_size, nn_size, output_size):
    """Deterministic init mimicking torch.nn.Linear (uniform +/- 1/sqrt(fan_in))."""
    k1, k2, k3, k4 = jax.random.split(key, 4)
    bound1 = 1.0 / jnp.sqrt(jnp.float32(input_size))
    bound2 = 1.0 / jnp.sqrt(jnp.float32(nn_size))
    w1 = jax.random.uniform(k1, (nn_size, input_size), jnp.float32, -bound1, bound1)
    b1 = jax.random.uniform(k2, (nn_size,), jnp.float32, -bound1, bound1)
    w2 = jax.random.uniform(k3, (output_size, nn_size), jnp.float32, -bound2, bound2)
    b2 = jax.random.uniform(k4, (output_size,), jnp.float32, -bound2, bound2)
    return w1, b1, w2, b2


if __name__ == "__main__":
    # Small shapes consistent with the module's forward: x is (batch, input_size).
    input_size, nn_size, output_size = 32, 64, 2

    key = jax.random.PRNGKey(0)
    kx1, kx2, kp = jax.random.split(key, 3)
    w1, b1, w2, b2 = init_params(kp, input_size, nn_size, output_size)

    def ref_fwd(x):
        # Plain-JAX reference (same semantics as the PyTorch forward).
        return jnp.maximum(x @ w1.T + b1, 0.0) @ w2.T + b2

    # Case 1: small batch, single grid step, f32 compute path (tight tolerance).
    x1 = jax.random.normal(kx1, (8, input_size), dtype=jnp.float32)
    params_f32 = prepare_params(w1, b1, w2, b2, compute_dtype=jnp.float32)
    out1 = jax.block_until_ready(eva_classifier(x1, params_f32))
    assert out1.shape == (8, output_size)
    assert jnp.allclose(out1, ref_fwd(x1), atol=1e-4, rtol=1e-4)

    # Case 2: multi-step grid with a partial last batch tile, bf16 weights
    # (default compute path: f32 accumulation, ~1e-2 relative error expected).
    x2 = jax.random.normal(kx2, (40, input_size), dtype=jnp.float32)
    params_bf16 = prepare_params(w1, b1, w2, b2)
    out2 = jax.block_until_ready(eva_classifier(x2, params_bf16, block_b=16))
    assert out2.shape == (40, output_size)
    assert jnp.allclose(out2, ref_fwd(x2), atol=3e-2, rtol=3e-2)

    print("KERNEL_OK")
</pallas_src>

<mosaic_0001>
module attributes {stable_mosaic.version = 11 : i64} {
  func.func @eva_classifier_kernel(%arg0: i32, %arg1: memref<8x32xf32, #tpu.memory_space<vmem>>, %arg2: memref<32x128xf32, #tpu.memory_space<vmem>>, %arg3: memref<1x128xf32, #tpu.memory_space<vmem>>, %arg4: memref<128x2xf32, #tpu.memory_space<vmem>>, %arg5: memref<1x2xf32, #tpu.memory_space<vmem>>, %arg6: memref<8x2xf32, #tpu.memory_space<vmem>>) attributes {dimension_semantics = [#tpu.dimension_semantics<parallel>], iteration_bounds = array<i64: 1>, scalar_prefetch = 0 : i64, scratch_operands = 0 : i64, tpu.core_type = #tpu.core_type<tc>, window_params = [{transform_indices = @transform_0, window_bounds = array<i64: 8, 32>}, {pipeline_mode = #tpu.pipeline_mode<synchronous>, transform_indices = @transform_1, window_bounds = array<i64: 32, 128>}, {pipeline_mode = #tpu.pipeline_mode<synchronous>, transform_indices = @transform_2, window_bounds = array<i64: 1, 128>}, {pipeline_mode = #tpu.pipeline_mode<synchronous>, transform_indices = @transform_3, window_bounds = array<i64: 128, 2>}, {pipeline_mode = #tpu.pipeline_mode<synchronous>, transform_indices = @transform_4, window_bounds = array<i64: 1, 2>}, {transform_indices = @transform_5, window_bounds = array<i64: 8, 2>}]} {
    %c0 = arith.constant 0 : index
    %c0_0 = arith.constant 0 : index
    %0 = vector.load %arg1[%c0, %c0_0] : memref<8x32xf32, #tpu.memory_space<vmem>>, vector<8x32xf32>
    %c0_1 = arith.constant 0 : index
    %c0_2 = arith.constant 0 : index
    %1 = vector.load %arg2[%c0_1, %c0_2] : memref<32x128xf32, #tpu.memory_space<vmem>>, vector<32x128xf32>
    %cst = arith.constant dense<0.000000e+00> : vector<8x128xf32>
    %2 = tpu.matmul %0, %1, %cst {dimension_numbers = #tpu.dot_dimension_numbers<[1], [0], [0], [1], [0, 0, 1, 1], [], []>} : vector<8x32xf32>, vector<32x128xf32>, vector<8x128xf32> -> vector<8x128xf32>
    %c0_3 = arith.constant 0 : index
    %c0_4 = arith.constant 0 : index
    %3 = vector.load %arg3[%c0_3, %c0_4] : memref<1x128xf32, #tpu.memory_space<vmem>>, vector<1x128xf32>
    %4 = vector.broadcast %3 : vector<1x128xf32> to vector<8x128xf32>
    %5 = arith.addf %2, %4 : vector<8x128xf32>
    %cst_5 = arith.constant 0.000000e+00 : f32
    %6 = vector.broadcast %cst_5 : f32 to vector<8x128xf32>
    %7 = arith.maximumf %5, %6 : vector<8x128xf32>
    %c0_6 = arith.constant 0 : index
    %c0_7 = arith.constant 0 : index
    %8 = vector.load %arg4[%c0_6, %c0_7] : memref<128x2xf32, #tpu.memory_space<vmem>>, vector<128x2xf32>
    %cst_8 = arith.constant dense<0.000000e+00> : vector<8x2xf32>
    %9 = tpu.matmul %7, %8, %cst_8 {dimension_numbers = #tpu.dot_dimension_numbers<[1], [0], [0], [1], [0, 0, 1, 1], [], []>} : vector<8x128xf32>, vector<128x2xf32>, vector<8x2xf32> -> vector<8x2xf32>
    %c0_9 = arith.constant 0 : index
    %c0_10 = arith.constant 0 : index
    %10 = vector.load %arg5[%c0_9, %c0_10] : memref<1x2xf32, #tpu.memory_space<vmem>>, vector<1x2xf32>
    %11 = vector.broadcast %10 : vector<1x2xf32> to vector<8x2xf32>
    %12 = arith.addf %9, %11 : vector<8x2xf32>
    %c0_11 = arith.constant 0 : index
    %c0_12 = arith.constant 0 : index
    %13 = vector.load %arg6[%c0_11, %c0_12] : memref<8x2xf32, #tpu.memory_space<vmem>>, vector<8x2xf32>
    tpu.vector_store %arg6[%c0_11, %c0_12], %12 {strides = array<i32>} : memref<8x2xf32, #tpu.memory_space<vmem>>, vector<8x2xf32>,
    return
  }
  func.func @transform_0(%arg0: i32) -> (i32, i32) {
    %c0_i32 = arith.constant 0 : i32
    %c0_i32_0 = arith.constant 0 : i32
    return %arg0, %c0_i32 : i32, i32
  }
  func.func @transform_1(%arg0: i32) -> (i32, i32) {
    %c0_i32 = arith.constant 0 : i32
    %c0_i32_0 = arith.constant 0 : i32
    %c0_i32_1 = arith.constant 0 : i32
    return %c0_i32, %c0_i32_0 : i32, i32
  }
  func.func @transform_2(%arg0: i32) -> (i32, i32) {
    %c0_i32 = arith.constant 0 : i32
    %c0_i32_0 = arith.constant 0 : i32
    %c0_i32_1 = arith.constant 0 : i32
    return %c0_i32, %c0_i32_0 : i32, i32
  }
  func.func @transform_3(%arg0: i32) -> (i32, i32) {
    %c0_i32 = arith.constant 0 : i32
    %c0_i32_0 = arith.constant 0 : i32
    %c0_i32_1 = arith.constant 0 : i32
    return %c0_i32, %c0_i32_0 : i32, i32
  }
  func.func @transform_4(%arg0: i32) -> (i32, i32) {
    %c0_i32 = arith.constant 0 : i32
    %c0_i32_0 = arith.constant 0 : i32
    %c0_i32_1 = arith.constant 0 : i32
    return %c0_i32, %c0_i32_0 : i32, i32
  }
  func.func @transform_5(%arg0: i32) -> (i32, i32) {
    %c0_i32 = arith.constant 0 : i32
    %c0_i32_0 = arith.constant 0 : i32
    return %arg0, %c0_i32 : i32, i32
  }
}

</mosaic_0001>

<llo_original>
// kernel: tpu_custom_call.1
$region0: #{tpu_custom_call.1}
  #allocation0 [shape = 'u32[]', space=smem, size = 0x4, offset = 0x4, fixed_abs, tag = 'smem constant byte address 0x4 - core index']
  #allocation1 [shape = 'u32[72,128]{1,0:T(1,128)}', space=vmem, size = 0x9000, scoped, tag = 'internal scratch']
  %s0 = inlined_call_operand.vmem [shape: f32[8,32], index: 0, kind: input, shape index: {}]
  %s1 = inlined_call_operand.vmem [shape: f32[32,128], index: 1, kind: input, shape index: {}]
  %s2 = inlined_call_operand.vmem [shape: f32[1,128], index: 2, kind: input, shape index: {}]
  %s3 = inlined_call_operand.vmem [shape: f32[128,2], index: 3, kind: input, shape index: {}]
  %s4 = inlined_call_operand.vmem [shape: f32[1,2], index: 4, kind: input, shape index: {}]
  %s5 = inlined_call_operand.vmem [shape: f32[8,2], index: 5, kind: output, shape index: {}]
  %s6 = sld [smem:[#allocation0]]
  $region30: #{tpu_custom_call.1} parent=0
    _
  %s8 = ssub.s32 1, %s6
  %s9 = scalar_select 0, %s8, %s6
  // Predicated region
  $region2: #{tpu_custom_call.1} parent=0 // pred_check
    _
  $region3: #{tpu_custom_call.1} parent=0 // pred_check_branch
    %11 = sbr.rel (0) target = $region5
  $region4: #{tpu_custom_call.1} parent=0 // pred_region
    _
  $region5: #{tpu_custom_call.1} parent=0 // pred_fallthru
    _
  // Predicated region
  $region6: #{tpu_custom_call.1} parent=0 // pred_check
    _
  $region7: #{tpu_custom_call.1} parent=0 // pred_check_branch
    %13 = sbr.rel (0) target = $region9
  $region8: #{tpu_custom_call.1} parent=0 // pred_region
    _
  $region9: #{tpu_custom_call.1} parent=0 // pred_fallthru
    _
  // Predicated region
  $region10: #{tpu_custom_call.1} parent=0 // pred_check
    _
  $region11: #{tpu_custom_call.1} parent=0 // pred_check_branch
    %15 = sbr.rel (0) target = $region13
  $region12: #{tpu_custom_call.1} parent=0 // pred_region
    _
  $region13: #{tpu_custom_call.1} parent=0 // pred_fallthru
    _
  // Predicated region
  $region14: #{tpu_custom_call.1} parent=0 // pred_check
    _
  $region15: #{tpu_custom_call.1} parent=0 // pred_check_branch
    %17 = sbr.rel (0) target = $region17
  $region16: #{tpu_custom_call.1} parent=0 // pred_region
    _
  $region17: #{tpu_custom_call.1} parent=0 // pred_fallthru
    _
  // Predicated region
  $region18: #{tpu_custom_call.1} parent=0 // pred_check
    _
  $region19: #{tpu_custom_call.1} parent=0 // pred_check_branch
    %19 = sbr.rel (0) target = $region21
  $region20: #{tpu_custom_call.1} parent=0 // pred_region
    _
  $region21: #{tpu_custom_call.1} parent=0 // pred_fallthru
    _
  %v20 = vld [vmem:[%s0] sm:$0xff]
  %v21 = vld [vmem:[%s1] sm:$0xff]
  %v22 = vld [vmem:[%s1 + $0x8] sm:$0xff]
  %v23 = vld [vmem:[%s1 + $0x10] sm:$0xff]
  %v24 = vld [vmem:[%s1 + $0x18] sm:$0xff]
  %v25 = vld [vmem:[%s2] sm:$0x1]
  %v27 = vperm.slane %v25, 0
  %vm29 = vcmask 261120
  %v31 = vsel %vm29, %v20, 0
  %33 = vmatpush.msra.mxu0 0.0
  %34 = vmatpush.msra.mxu0 0.0
  %35 = vmatpush.msra.mxu0 0.0
  %36 = vmatpush.msra.mxu0 0.0
  %37 = vmatpush.msra.mxu0 0.0
  %38 = vmatpush.msra.mxu0 0.0
  %39 = vmatpush.msra.mxu0 0.0
  %40 = vmatpush.msra.mxu0 0.0
  %41 = vmatpush.msra.mxu0 0.0
  %42 = vmatpush.msra.mxu0 0.0
  %43 = vmatpush.msra.mxu0 0.0
  %44 = vmatpush.msra.mxu0 0.0
  %45 = vmatpush.msra.mxu0 %v24
  %46 = vmatpush.msra.mxu0 %v23
  %47 = vmatpush.msra.mxu0 %v22
  %48 = vmatpush.msra.mxu0 %v21
  %49 = vmatmul.f32.gmra.mxu0 %v31
  %v50 = vpop.f32.mrf.mxu0
  %v51 = vadd.f32 %v27, %v50
  %52 = vdwg.mxu0
  %v53 = vmax.f32 %v51, 0.0
  %v54 = vld [vmem:[%s3] sm:$0xff]
  %v55 = vld [vmem:[%s3 + $0x8] sm:$0xff]
  %v56 = vld [vmem:[%s3 + $0x10] sm:$0xff]
  %v57 = vld [vmem:[%s3 + $0x18] sm:$0xff]
  %v58 = vld [vmem:[%s3 + $0x20] sm:$0xff]
  %v59 = vld [vmem:[%s3 + $0x28] sm:$0xff]
  %v60 = vld [vmem:[%s3 + $0x30] sm:$0xff]
  %v61 = vld [vmem:[%s3 + $0x38] sm:$0xff]
  %v62 = vld [vmem:[%s3 + $0x40] sm:$0xff]
  %v63 = vld [vmem:[%s3 + $0x48] sm:$0xff]
  %v64 = vld [vmem:[%s3 + $0x50] sm:$0xff]
  %v65 = vld [vmem:[%s3 + $0x58] sm:$0xff]
  %v66 = vld [vmem:[%s3 + $0x60] sm:$0xff]
  %v67 = vld [vmem:[%s3 + $0x68] sm:$0xff]
  %v68 = vld [vmem:[%s3 + $0x70] sm:$0xff]
  %v69 = vld [vmem:[%s3 + $0x78] sm:$0xff]
  %v70 = vld [vmem:[%s4] sm:$0x1]
  %v72 = vperm.slane %v70, 0
  %74 = vmatpush.msra.mxu0 %v69
  %75 = vmatpush.msra.mxu0 %v68
  %76 = vmatpush.msra.mxu0 %v67
  %77 = vmatpush.msra.mxu0 %v66
  %78 = vmatpush.msra.mxu0 %v65
  %79 = vmatpush.msra.mxu0 %v64
  %80 = vmatpush.msra.mxu0 %v63
  %81 = vmatpush.msra.mxu0 %v62
  %82 = vmatpush.msra.mxu0 %v61
  %83 = vmatpush.msra.mxu0 %v60
  %84 = vmatpush.msra.mxu0 %v59
  %85 = vmatpush.msra.mxu0 %v58
  %86 = vmatpush.msra.mxu0 %v57
  %87 = vmatpush.msra.mxu0 %v56
  %88 = vmatpush.msra.mxu0 %v55
  %89 = vmatpush.msra.mxu0 %v54
  %90 = vmatmul.f32.gmra.mxu0 %v53
  %v91 = vpop.f32.mrf.mxu0
  %v92 = vadd.f32 %v72, %v91
  %93 = vdwg.mxu0
  %vm94 = vcmask 15360
  %95 = vst.msk [vmem:[%s5] sm:$0xff] %vm94, %v92
  // Predicated region
  $region22: #{tpu_custom_call.1} parent=0 // pred_check
    _
  $region23: #{tpu_custom_call.1} parent=0 // pred_check_branch
    %97 = sbr.rel (0) target = $region25
  $region24: #{tpu_custom_call.1} parent=0 // pred_region
    _
  $region25: #{tpu_custom_call.1} parent=0 // pred_fallthru
    _
  // Predicated region
  $region26: #{tpu_custom_call.1} parent=0 // pred_check
    _
  $region27: #{tpu_custom_call.1} parent=0 // pred_check_branch
    %99 = sbr.rel (0) target = $region29
  $region28: #{tpu_custom_call.1} parent=0 // pred_region
    _
  $region29: #{tpu_custom_call.1} parent=0 // pred_fallthru
    _

</llo_original>
